<compile_context>
chip_gen: v6e
topology: v6e:2x2x1
jax: 0.10.0
libtpu: 0.0.40
codegen_flags: <defaults>
</compile_context>

<pallas_src>
import functools

import jax
import jax.numpy as jnp
from jax.experimental import pallas as pl
from jax.experimental.pallas import tpu as pltpu


def _hswish(v):
    # x * relu6(x + 3) / 6
    return v * (jnp.clip(v + 3.0, 0.0, 6.0) * (1.0 / 6.0))


def _rcab_kernel(x_ref, lh_ref, rh_ref, w1_ref, t1_ref, w2_ref, t2_ref, o_ref,
                 *, K, pad, L, Lt, res_scale):
    """One (batch, L-tile) grid step.

    x_ref : (1, C, Lt)      input tile (x.dtype)
    lh_ref: (1, 1, C, hw)   left halo: last 2*pad input cols of tile j-1 (zeros at j=0)
    rh_ref: (1, 1, C, hw)   right halo: first 2*pad input cols of tile j+1 (zeros at last)
    wN_ref: (C, K*C) bf16   conv weights with BN scale folded in; col block k = W[:, :, k]
    tN_ref: (C, 1)   f32    per-channel shift (BN beta - mean*scale + bias*scale)
    o_ref : (1, C, Lt)      output tile (x.dtype)
    """
    j = pl.program_id(1)
    C = x_ref.shape[1]
    Wext = Lt + 2 * pad                       # conv1 is computed on a halo'd range

    x_t = x_ref[0]                            # (C, Lt)
    if pad > 0:
        xh = jnp.concatenate([lh_ref[0, 0], x_t, rh_ref[0, 0]], axis=1)  # (C, Lt+4p)
    else:
        xh = x_t
    xh = xh.astype(jnp.bfloat16)

    # --- conv1 (+BN, bias folded) + h_swish on global cols [j*Lt - pad, j*Lt + Lt + pad)
    if K > 1:
        s1 = jnp.concatenate([xh[:, k:k + Wext] for k in range(K)], axis=0)  # (K*C, Wext)
    else:
        s1 = xh
    h1 = jnp.dot(w1_ref[...], s1, preferred_element_type=jnp.float32)
    h1 = _hswish(h1 + t1_ref[...])            # (C, Wext) f32

    if pad > 0:
        # Zero halo columns that fall outside [0, L): that *is* conv2's "same"
        # zero padding at the sequence edges.  Interior tiles are unaffected.
        col = jax.lax.broadcasted_iota(jnp.int32, (C, Wext), 1)
        g = j * Lt - pad + col
        h1 = jnp.where((g >= 0) & (g < L), h1, 0.0)
    h1 = h1.astype(jnp.bfloat16)

    # --- conv2 (+BN, bias folded) + h_swish on global cols [j*Lt, j*Lt + Lt)
    if K > 1:
        s2 = jnp.concatenate([h1[:, k:k + Lt] for k in range(K)], axis=0)    # (K*C, Lt)
    else:
        s2 = h1
    h2 = jnp.dot(w2_ref[...], s2, preferred_element_type=jnp.float32)
    h2 = _hswish(h2 + t2_ref[...])            # (C, Lt) f32

    # Residual: re-read the x block (still resident in VMEM) at the add.
    o_ref[0] = (h2 * res_scale + x_ref[0].astype(jnp.float32)).astype(o_ref.dtype)


def _pick_l_tile(L, C, pad):
    """Largest L-tile that is a multiple of 128, divides L, and keeps a (C, Lt)
    f32 slab <= ~2 MiB (double-buffered blocks + ~5 intermediates then fit the
    tightest scoped-VMEM defaults: v5e 16 MiB, v7x 32 MiB)."""
    cap = (2 * 1024 * 1024) // (4 * max(C, 1))
    cap = max(128, min(8192, (cap // 128) * 128))
    if L <= cap:
        return L, 1
    t = cap
    while t >= 128:
        if L % t == 0 and t >= 2 * pad:
            return t, L // t
        t -= 128
    # TODO(synk): masked ragged final tile; for now fall back to one full-L tile.
    return L, 1


def rcab_forward(x, w1, b1, bn1, w2, b2, bn2, *, res_scale=1.0, eps=1e-5,
                 l_tile=None):
    """RCAB forward (inference-mode BN).

    x : (B, C, L); wN: (C, C, K) PyTorch Conv1d layout (out, in, k); bN: (C,);
    bnN = (gamma, beta, running_mean, running_var), each (C,).
    """
    B, C, L = x.shape
    K = w1.shape[-1]
    assert K % 2 == 1, "Conv1d with padding=K//2 keeps the length only for odd K"
    pad = K // 2

    def fold(w, b, g, be, m, v):
        scale = (g / jnp.sqrt(v + eps)).astype(jnp.float32)
        shift = (be - m * scale + b * scale).astype(jnp.float32)
        wf = w.astype(jnp.float32) * scale[:, None, None]                  # (C, C, K)
        wflat = jnp.concatenate([wf[:, :, k] for k in range(K)], axis=1)   # (C, K*C)
        return wflat.astype(jnp.bfloat16), shift.reshape(C, 1)

    w1f, t1 = fold(w1, b1, *bn1)
    w2f, t2 = fold(w2, b2, *bn2)

    if l_tile is None:
        Lt, nL = _pick_l_tile(L, C, pad)
    else:
        Lt = int(l_tile)
        assert Lt >= 1 and L % Lt == 0 and Lt >= 2 * pad
        nL = L // Lt

    # Tiny halo side-arrays: (B, nL, C, hw) with hw = 2*pad (dummy width 1 if pad==0).
    hw = max(2 * pad, 1)
    if nL == 1 or pad == 0:
        lh = jnp.zeros((B, nL, C, hw), x.dtype)
        rh = jnp.zeros((B, nL, C, hw), x.dtype)
    else:
        xr = x.reshape(B, C, nL, Lt)
        z = jnp.zeros((B, C, 1, hw), x.dtype)
        lh = jnp.concatenate([z, xr[:, :, :-1, Lt - hw:]], axis=2)   # (B, C, nL, hw)
        rh = jnp.concatenate([xr[:, :, 1:, :hw], z], axis=2)
        lh = jnp.transpose(lh, (0, 2, 1, 3))                          # (B, nL, C, hw)
        rh = jnp.transpose(rh, (0, 2, 1, 3))

    kern = functools.partial(_rcab_kernel, K=K, pad=pad, L=L, Lt=Lt,
                             res_scale=float(res_scale))

    out = pl.pallas_call(
        kern,
        out_shape=jax.ShapeDtypeStruct((B, C, L), x.dtype),
        grid_spec=pltpu.PrefetchScalarGridSpec(
            num_scalar_prefetch=0,
            grid=(B, nL),
            in_specs=[
                pl.BlockSpec((1, C, Lt), lambda b, j: (b, 0, j)),        # x tile
                pl.BlockSpec((1, 1, C, hw), lambda b, j: (b, j, 0, 0)),  # left halo
                pl.BlockSpec((1, 1, C, hw), lambda b, j: (b, j, 0, 0)),  # right halo
                pl.BlockSpec((C, K * C), lambda b, j: (0, 0)),           # W1 (bf16, BN folded)
                pl.BlockSpec((C, 1), lambda b, j: (0, 0)),               # shift1
                pl.BlockSpec((C, K * C), lambda b, j: (0, 0)),           # W2 (bf16, BN folded)
                pl.BlockSpec((C, 1), lambda b, j: (0, 0)),               # shift2
            ],
            out_specs=pl.BlockSpec((1, C, Lt), lambda b, j: (b, 0, j)),
        ),
        compiler_params=pltpu.CompilerParams(
            dimension_semantics=("parallel", "parallel"),
        ),
    )(x, lh, rh, w1f, t1, w2f, t2)
    return out


def _ref_rcab(x, w1, b1, bn1, w2, b2, bn2, *, res_scale=1.0, eps=1e-5):
    """Pure-JAX reference matching the PyTorch module (inference-mode BN)."""
    def conv_bn_act(h, w, b, g, be, m, v):
        pad = w.shape[-1] // 2
        y = jax.lax.conv_general_dilated(
            h, w, window_strides=(1,), padding=[(pad, pad)],
            dimension_numbers=("NCH", "OIH", "NCH"))
        y = y + b[None, :, None]
        y = (y - m[None, :, None]) / jnp.sqrt(v[None, :, None] + eps)
        y = y * g[None, :, None] + be[None, :, None]
        return y * (jnp.clip(y + 3.0, 0.0, 6.0) / 6.0)   # h_swish

    h = conv_bn_act(x, w1, b1, *bn1)
    h = conv_bn_act(h, w2, b2, *bn2)
    return h * res_scale + x


if __name__ == "__main__":
    key = jax.random.PRNGKey(0)

    def make_params(k, C, K):
        ks = jax.random.split(k, 12)
        w1 = jax.random.normal(ks[0], (C, C, K), jnp.float32) * 0.3
        b1 = 0.1 * jax.random.normal(ks[1], (C,), jnp.float32)
        bn1 = (1.0 + 0.1 * jax.random.normal(ks[2], (C,), jnp.float32),
               0.1 * jax.random.normal(ks[3], (C,), jnp.float32),
               0.1 * jax.random.normal(ks[4], (C,), jnp.float32),
               1.0 + 0.1 * jax.random.uniform(ks[5], (C,), jnp.float32))
        w2 = jax.random.normal(ks[6], (C, C, K), jnp.float32) * 0.3
        b2 = 0.1 * jax.random.normal(ks[7], (C,), jnp.float32)
        bn2 = (1.0 + 0.1 * jax.random.normal(ks[8], (C,), jnp.float32),
               0.1 * jax.random.normal(ks[9], (C,), jnp.float32),
               0.1 * jax.random.normal(ks[10], (C,), jnp.float32),
               1.0 + 0.1 * jax.random.uniform(ks[11], (C,), jnp.float32))
        return w1, b1, bn1, w2, b2, bn2

    def check(B, C, L, K, l_tile=None, seed_idx=0):
        kx, kp = jax.random.split(jax.random.fold_in(key, seed_idx))
        x = jax.random.normal(kx, (B, C, L), jnp.float32)
        w1, b1, bn1, w2, b2, bn2 = make_params(kp, C, K)
        y = rcab_forward(x, w1, b1, bn1, w2, b2, bn2, res_scale=1.0, l_tile=l_tile)
        y = jax.block_until_ready(y)
        ref = _ref_rcab(x, w1, b1, bn1, w2, b2, bn2, res_scale=1.0)
        assert y.shape == x.shape and y.dtype == x.dtype
        err = float(jnp.max(jnp.abs(y - ref)))
        # bf16 MXU operands with f32 accumulation -> relative tolerance ~2%.
        tol = 5e-3 + 2e-2 * float(jnp.max(jnp.abs(ref)))
        assert err < tol, f"max abs err {err} (tol {tol}) B={B} C={C} L={L} K={K} Lt={l_tile}"

    # Small, unaligned L: single L-tile path, zero wrapper padding / slicing.
    check(2, 4, 33, 3, seed_idx=0)
    # Larger case exercising the halo'd L-tiling path: grid = (B, nL) = (1, 4).
    check(1, 8, 512, 3, l_tile=128, seed_idx=1)

    print("KERNEL_OK")
</pallas_src>

<mosaic_0001>
module attributes {stable_mosaic.version = 11 : i64} {
  func.func @_rcab_kernel(%arg0: i32, %arg1: i32, %arg2: memref<1x4x33xf32, #tpu.memory_space<vmem>>, %arg3: memref<1x1x4x2xf32, #tpu.memory_space<vmem>>, %arg4: memref<1x1x4x2xf32, #tpu.memory_space<vmem>>, %arg5: memref<4x12xbf16, #tpu.memory_space<vmem>>, %arg6: memref<4x1xf32, #tpu.memory_space<vmem>>, %arg7: memref<4x12xbf16, #tpu.memory_space<vmem>>, %arg8: memref<4x1xf32, #tpu.memory_space<vmem>>, %arg9: memref<1x4x33xf32, #tpu.memory_space<vmem>>) attributes {dimension_semantics = [#tpu.dimension_semantics<parallel>, #tpu.dimension_semantics<parallel>], iteration_bounds = array<i64: 2, 1>, scalar_prefetch = 0 : i64, scratch_operands = 0 : i64, tpu.core_type = #tpu.core_type<tc>, window_params = [{transform_indices = @transform_0, window_bounds = array<i64: 1, 4, 33>}, {transform_indices = @transform_1, window_bounds = array<i64: 1, 1, 4, 2>}, {transform_indices = @transform_2, window_bounds = array<i64: 1, 1, 4, 2>}, {pipeline_mode = #tpu.pipeline_mode<synchronous>, transform_indices = @transform_3, window_bounds = array<i64: 4, 12>}, {pipeline_mode = #tpu.pipeline_mode<synchronous>, transform_indices = @transform_4, window_bounds = array<i64: 4, 1>}, {pipeline_mode = #tpu.pipeline_mode<synchronous>, transform_indices = @transform_5, window_bounds = array<i64: 4, 12>}, {pipeline_mode = #tpu.pipeline_mode<synchronous>, transform_indices = @transform_6, window_bounds = array<i64: 4, 1>}, {transform_indices = @transform_7, window_bounds = array<i64: 1, 4, 33>}]} {
    %c0 = arith.constant 0 : index
    %c0_0 = arith.constant 0 : index
    %c0_1 = arith.constant 0 : index
    %0 = vector.load %arg2[%c0, %c0_0, %c0_1] : memref<1x4x33xf32, #tpu.memory_space<vmem>>, vector<1x4x33xf32>
    %1 = vector.shape_cast %0 : vector<1x4x33xf32> to vector<4x33xf32>
    %c0_2 = arith.constant 0 : index
    %c0_3 = arith.constant 0 : index
    %c0_4 = arith.constant 0 : index
    %c0_5 = arith.constant 0 : index
    %2 = vector.load %arg3[%c0_2, %c0_3, %c0_4, %c0_5] : memref<1x1x4x2xf32, #tpu.memory_space<vmem>>, vector<1x1x4x2xf32>
    %3 = vector.shape_cast %2 : vector<1x1x4x2xf32> to vector<4x2xf32>
    %c0_6 = arith.constant 0 : index
    %c0_7 = arith.constant 0 : index
    %c0_8 = arith.constant 0 : index
    %c0_9 = arith.constant 0 : index
    %4 = vector.load %arg4[%c0_6, %c0_7, %c0_8, %c0_9] : memref<1x1x4x2xf32, #tpu.memory_space<vmem>>, vector<1x1x4x2xf32>
    %5 = vector.shape_cast %4 : vector<1x1x4x2xf32> to vector<4x2xf32>
    %6 = tpu.concatenate %3, %1, %5 in 1 : vector<4x2xf32>, vector<4x33xf32>, vector<4x2xf32> -> vector<4x37xf32>
    %7 = arith.truncf %6 : vector<4x37xf32> to vector<4x37xbf16>
    %8 = vector.extract_strided_slice %7 {offsets = [0, 0], sizes = [4, 35], strides = [1, 1]} : vector<4x37xbf16> to vector<4x35xbf16>
    %9 = vector.extract_strided_slice %7 {offsets = [0, 1], sizes = [4, 35], strides = [1, 1]} : vector<4x37xbf16> to vector<4x35xbf16>
    %10 = vector.extract_strided_slice %7 {offsets = [0, 2], sizes = [4, 35], strides = [1, 1]} : vector<4x37xbf16> to vector<4x35xbf16>
    %11 = tpu.concatenate %8, %9, %10 in 0 : vector<4x35xbf16>, vector<4x35xbf16>, vector<4x35xbf16> -> vector<12x35xbf16>
    %c0_10 = arith.constant 0 : index
    %c0_11 = arith.constant 0 : index
    %12 = vector.load %arg5[%c0_10, %c0_11] : memref<4x12xbf16, #tpu.memory_space<vmem>>, vector<4x12xbf16>
    %cst = arith.constant dense<0.000000e+00> : vector<4x35xf32>
    %13 = tpu.matmul %12, %11, %cst {dimension_numbers = #tpu.dot_dimension_numbers<[1], [0], [0], [1], [0, 0, 1, 1], [], []>} : vector<4x12xbf16>, vector<12x35xbf16>, vector<4x35xf32> -> vector<4x35xf32>
    %c0_12 = arith.constant 0 : index
    %c0_13 = arith.constant 0 : index
    %14 = vector.load %arg6[%c0_12, %c0_13] : memref<4x1xf32, #tpu.memory_space<vmem>>, vector<4x1xf32>
    %15 = vector.broadcast %14 : vector<4x1xf32> to vector<4x35xf32>
    %16 = arith.addf %13, %15 : vector<4x35xf32>
    %cst_14 = arith.constant 3.000000e+00 : f32
    %17 = vector.broadcast %cst_14 : f32 to vector<4x35xf32>
    %18 = arith.addf %16, %17 : vector<4x35xf32>
    %cst_15 = arith.constant 0.000000e+00 : f32
    %cst_16 = arith.constant 6.000000e+00 : f32
    %19 = vector.broadcast %cst_15 : f32 to vector<4x35xf32>
    %20 = arith.maximumf %19, %18 : vector<4x35xf32>
    %21 = vector.broadcast %cst_16 : f32 to vector<4x35xf32>
    %22 = arith.minimumf %21, %20 : vector<4x35xf32>
    %cst_17 = arith.constant 0.166666672 : f32
    %23 = vector.broadcast %cst_17 : f32 to vector<4x35xf32>
    %24 = arith.mulf %22, %23 : vector<4x35xf32>
    %25 = arith.mulf %16, %24 : vector<4x35xf32>
    %26 = tpu.iota {dimensions = array<i32: 1>} : vector<4x35xi32>
    %c33_i32 = arith.constant 33 : i32
    %27 = arith.muli %arg1, %c33_i32 : i32
    %c1_i32 = arith.constant 1 : i32
    %28 = arith.subi %27, %c1_i32 : i32
    %29 = vector.broadcast %28 : i32 to vector<4x35xi32>
    %30 = arith.addi %29, %26 : vector<4x35xi32>
    %c0_i32 = arith.constant 0 : i32
    %31 = vector.broadcast %c0_i32 : i32 to vector<4x35xi32>
    %32 = arith.cmpi sge, %30, %31 : vector<4x35xi32>
    %c33_i32_18 = arith.constant 33 : i32
    %33 = vector.broadcast %c33_i32_18 : i32 to vector<4x35xi32>
    %34 = arith.cmpi slt, %30, %33 : vector<4x35xi32>
    %35 = arith.andi %32, %34 : vector<4x35xi1>
    %cst_19 = arith.constant 0.000000e+00 : f32
    %36 = vector.broadcast %cst_19 : f32 to vector<4x35xf32>
    %37 = arith.select %35, %25, %36 : vector<4x35xi1>, vector<4x35xf32>
    %38 = arith.truncf %37 : vector<4x35xf32> to vector<4x35xbf16>
    %39 = vector.extract_strided_slice %38 {offsets = [0, 0], sizes = [4, 33], strides = [1, 1]} : vector<4x35xbf16> to vector<4x33xbf16>
    %40 = vector.extract_strided_slice %38 {offsets = [0, 1], sizes = [4, 33], strides = [1, 1]} : vector<4x35xbf16> to vector<4x33xbf16>
    %41 = vector.extract_strided_slice %38 {offsets = [0, 2], sizes = [4, 33], strides = [1, 1]} : vector<4x35xbf16> to vector<4x33xbf16>
    %42 = tpu.concatenate %39, %40, %41 in 0 : vector<4x33xbf16>, vector<4x33xbf16>, vector<4x33xbf16> -> vector<12x33xbf16>
    %c0_20 = arith.constant 0 : index
    %c0_21 = arith.constant 0 : index
    %43 = vector.load %arg7[%c0_20, %c0_21] : memref<4x12xbf16, #tpu.memory_space<vmem>>, vector<4x12xbf16>
    %cst_22 = arith.constant dense<0.000000e+00> : vector<4x33xf32>
    %44 = tpu.matmul %43, %42, %cst_22 {dimension_numbers = #tpu.dot_dimension_numbers<[1], [0], [0], [1], [0, 0, 1, 1], [], []>} : vector<4x12xbf16>, vector<12x33xbf16>, vector<4x33xf32> -> vector<4x33xf32>
    %c0_23 = arith.constant 0 : index
    %c0_24 = arith.constant 0 : index
    %45 = vector.load %arg8[%c0_23, %c0_24] : memref<4x1xf32, #tpu.memory_space<vmem>>, vector<4x1xf32>
    %46 = vector.broadcast %45 : vector<4x1xf32> to vector<4x33xf32>
    %47 = arith.addf %44, %46 : vector<4x33xf32>
    %cst_25 = arith.constant 3.000000e+00 : f32
    %48 = vector.broadcast %cst_25 : f32 to vector<4x33xf32>
    %49 = arith.addf %47, %48 : vector<4x33xf32>
    %cst_26 = arith.constant 0.000000e+00 : f32
    %cst_27 = arith.constant 6.000000e+00 : f32
    %50 = vector.broadcast %cst_26 : f32 to vector<4x33xf32>
    %51 = arith.maximumf %50, %49 : vector<4x33xf32>
    %52 = vector.broadcast %cst_27 : f32 to vector<4x33xf32>
    %53 = arith.minimumf %52, %51 : vector<4x33xf32>
    %cst_28 = arith.constant 0.166666672 : f32
    %54 = vector.broadcast %cst_28 : f32 to vector<4x33xf32>
    %55 = arith.mulf %53, %54 : vector<4x33xf32>
    %56 = arith.mulf %47, %55 : vector<4x33xf32>
    %cst_29 = arith.constant 1.000000e+00 : f32
    %57 = vector.broadcast %cst_29 : f32 to vector<4x33xf32>
    %58 = arith.mulf %56, %57 : vector<4x33xf32>
    %c0_30 = arith.constant 0 : index
    %c0_31 = arith.constant 0 : index
    %c0_32 = arith.constant 0 : index
    %59 = vector.load %arg2[%c0_30, %c0_31, %c0_32] : memref<1x4x33xf32, #tpu.memory_space<vmem>>, vector<1x4x33xf32>
    %60 = vector.shape_cast %59 : vector<1x4x33xf32> to vector<4x33xf32>
    %61 = arith.addf %58, %60 : vector<4x33xf32>
    %c0_33 = arith.constant 0 : index
    %c0_34 = arith.constant 0 : index
    %c0_35 = arith.constant 0 : index
    %62 = vector.load %arg9[%c0_33, %c0_34, %c0_35] : memref<1x4x33xf32, #tpu.memory_space<vmem>>, vector<1x4x33xf32>
    %63 = vector.shape_cast %62 : vector<1x4x33xf32> to vector<4x33xf32>
    %64 = vector.shape_cast %61 : vector<4x33xf32> to vector<1x4x33xf32>
    tpu.vector_store %arg9[%c0_33, %c0_34, %c0_35], %64 {strides = array<i32>} : memref<1x4x33xf32, #tpu.memory_space<vmem>>, vector<1x4x33xf32>,
    return
  }
  func.func @transform_0(%arg0: i32, %arg1: i32) -> (i32, i32, i32) {
    %c0_i32 = arith.constant 0 : i32
    %c0_i32_0 = arith.constant 0 : i32
    return %arg0, %c0_i32, %arg1 : i32, i32, i32
  }
  func.func @transform_1(%arg0: i32, %arg1: i32) -> (i32, i32, i32, i32) {
    %c0_i32 = arith.constant 0 : i32
    %c0_i32_0 = arith.constant 0 : i32
    %c0_i32_1 = arith.constant 0 : i32
    return %arg0, %arg1, %c0_i32, %c0_i32_0 : i32, i32, i32, i32
  }
  func.func @transform_2(%arg0: i32, %arg1: i32) -> (i32, i32, i32, i32) {
    %c0_i32 = arith.constant 0 : i32
    %c0_i32_0 = arith.constant 0 : i32
    %c0_i32_1 = arith.constant 0 : i32
    return %arg0, %arg1, %c0_i32, %c0_i32_0 : i32, i32, i32, i32
  }
  func.func @transform_3(%arg0: i32, %arg1: i32) -> (i32, i32) {
    %c0_i32 = arith.constant 0 : i32
    %c0_i32_0 = arith.constant 0 : i32
    %c0_i32_1 = arith.constant 0 : i32
    return %c0_i32, %c0_i32_0 : i32, i32
  }
  func.func @transform_4(%arg0: i32, %arg1: i32) -> (i32, i32) {
    %c0_i32 = arith.constant 0 : i32
    %c0_i32_0 = arith.constant 0 : i32
    %c0_i32_1 = arith.constant 0 : i32
    return %c0_i32, %c0_i32_0 : i32, i32
  }
  func.func @transform_5(%arg0: i32, %arg1: i32) -> (i32, i32) {
    %c0_i32 = arith.constant 0 : i32
    %c0_i32_0 = arith.constant 0 : i32
    %c0_i32_1 = arith.constant 0 : i32
    return %c0_i32, %c0_i32_0 : i32, i32
  }
  func.func @transform_6(%arg0: i32, %arg1: i32) -> (i32, i32) {
    %c0_i32 = arith.constant 0 : i32
    %c0_i32_0 = arith.constant 0 : i32
    %c0_i32_1 = arith.constant 0 : i32
    return %c0_i32, %c0_i32_0 : i32, i32
  }
  func.func @transform_7(%arg0: i32, %arg1: i32) -> (i32, i32, i32) {
    %c0_i32 = arith.constant 0 : i32
    %c0_i32_0 = arith.constant 0 : i32
    return %arg0, %c0_i32, %arg1 : i32, i32, i32
  }
}

</mosaic_0001>

<llo_original>
// kernel: tpu_custom_call.1
$region0: #{tpu_custom_call.1}
  #allocation0 [shape = 'u32[]', space=smem, size = 0x4, offset = 0x4, fixed_abs, tag = 'smem constant byte address 0x4 - core index']
  #allocation1 [shape = 'u32[144,128]{1,0:T(1,128)}', space=vmem, size = 0x12000, scoped, tag = 'internal scratch']
  %s0 = inlined_call_operand.vmem [shape: f32[2,4,33], index: 0, kind: input, shape index: {}]
  %s1 = inlined_call_operand.vmem [shape: f32[2,1,4,2], index: 1, kind: input, shape index: {}]
  %s2 = inlined_call_operand.vmem [shape: f32[2,1,4,2], index: 2, kind: input, shape index: {}]
  %s3 = inlined_call_operand.vmem [shape: bf16[4,12], index: 3, kind: input, shape index: {}]
  %s4 = inlined_call_operand.vmem [shape: f32[4,1], index: 4, kind: input, shape index: {}]
  %s5 = inlined_call_operand.vmem [shape: bf16[4,12], index: 5, kind: input, shape index: {}]
  %s6 = inlined_call_operand.vmem [shape: f32[4,1], index: 6, kind: input, shape index: {}]
  %s7 = inlined_call_operand.hbm [shape: f32[2,4,33], index: 7, kind: output, shape index: {}]
  %s8 = sld [smem:[#allocation0]]
  $region61: #{tpu_custom_call.1} parent=0
    _
  %s10 = ssub.s32 1, %s8
  %s11 = scalar_select 0, %s10, %s8
  $region1: #{tpu_custom_call.1} parent=0
    #allocation2 [shape = 'u8[4096]{0}', space=vmem, size = 0x1000, scoped, tag = 'output window, operand 0']
    #allocation3 [shape = 's32[2]{0}', space=sflag, size = 0x8, scoped, tag = 'scoped memory for tpu_custom_call.1']
    %12 = vsyncpa [#allocation3], 0
    %s13 = scalar_lea.sflag [#allocation3], 1
    %14 = vsyncpa %s13, 0
    loop: start=0, step=1, limit=4
    $region2: #{tpu_custom_call.1} parent=1 // loop_pre_header
      _
    $region3: #{tpu_custom_call.1} parent=1 // loop_header
      %s16 = sphi 0, %s20
      %p17 = scmp.ge.s32.totalorder %s16, 4
      %s23 = sphi 0, %s35
      %s24 = sphi 0, %s31
      %s25 = sphi 0, %s23
      %s26 = sphi 0, %s24
      %s27 = sphi 0, %s25
      %s28 = sphi 0, %s26
      %s40 = sphi 0, %s42
      %s43 = sphi 0, %s40
      %s44 = sphi 0, %s43
      %s60 = sphi 0, %s44
      %s68 = sphi 0, %s70
      %s71 = sphi 0, %s68
      %s72 = sphi 0, %s71
      %s88 = sphi 0, %s72
      %s96 = sphi 0, %s98
      %s99 = sphi 0, %s96
      %s100 = sphi 0, %s99
      %s116 = sphi 0, %s100
      %s120 = sphi 0, %s120
      %s122 = sphi 0, %s120
      %s123 = sphi 0, %s122
      %s137 = sphi 0, %s123
      %s141 = sphi 0, %s141
      %s143 = sphi 0, %s141
      %s144 = sphi 0, %s143
      %s158 = sphi 0, %s144
      %s162 = sphi 0, %s162
      %s164 = sphi 0, %s162
      %s165 = sphi 0, %s164
      %s179 = sphi 0, %s165
      %s183 = sphi 0, %s183
      %s185 = sphi 0, %s183
      %s186 = sphi 0, %s185
      %s200 = sphi 0, %s186
      %s208 = sphi 0, %s210
      %s211 = sphi 0, %s208
      %s212 = sphi 0, %s211
      %s228 = sphi 0, %s212
    $region4: #{tpu_custom_call.1} parent=1 // loop_header_branch
      %19 = sbr.rel (%p17) target = $region8
    $region5: #{tpu_custom_call.1} parent=1 // loop_body
      %s21 = ssub.s32 %s16, 1
      %s22 = ssub.s32 %s16, 2
      %s29 = sadd.s32 1, %s24
      %p30 = scmp.ge.s32.totalorder %s29, 1
      %s31 = scalar_select %p30, 0, %s29
      %s32 = sadd.s32 1, %s23
      %s33 = scalar_select %p30, %s32, %s23
      %p34 = scmp.ge.s32.totalorder %s33, 2
      %s35 = scalar_select %p34, 0, %s33
      %s36 = ssub.s32 %s23, %s35
      %s37 = ssub.s32 %s24, %s31
      %s38 = sor.u32 %s36, %s37
      %p39 = scmp.eq.s32.totalorder %s38, 0
      %s41 = sadd.s32 %s40, 1
      %s42 = scalar_select %p39, %s40, %s41
      %p45 = pneg %p39
      %p46 = scmp.eq.s32.totalorder %s16, 1
      %p47 = por %p45, %p46
      %p48 = scmp.ne.s32.totalorder %s40, %s43
      %p49 = scmp.eq.s32.totalorder %s16, 0
      %p50 = por %p48, %p49
      %p51 = scmp.ne.s32.totalorder %s40, %s43
      %p52 = scmp.eq.s32.totalorder %s21, 1
      %p53 = por %p51, %p52
      %p54 = scmp.ne.s32.totalorder %s43, %s44
      %p55 = scmp.eq.s32.totalorder %s21, 0
      %p56 = por %p54, %p55
      %p57 = scmp.ne.s32.totalorder %s43, %s44
      %p58 = scmp.eq.s32.totalorder %s22, 1
      %p59 = por %p57, %p58
      %p61 = scmp.ne.s32.totalorder %s44, %s60
      %p62 = scmp.eq.s32.totalorder %s22, 0
      %p63 = por %p61, %p62
      %s64 = ssub.s32 %s23, %s35
      %s65 = ssub.s32 %s24, %s31
      %s66 = sor.u32 %s64, %s65
      %p67 = scmp.eq.s32.totalorder %s66, 0
      %s69 = sadd.s32 %s68, 1
      %s70 = scalar_select %p67, %s68, %s69
      %p73 = pneg %p67
      %p74 = scmp.eq.s32.totalorder %s16, 1
      %p75 = por %p73, %p74
      %p76 = scmp.ne.s32.totalorder %s68, %s71
      %p77 = scmp.eq.s32.totalorder %s16, 0
      %p78 = por %p76, %p77
      %p79 = scmp.ne.s32.totalorder %s68, %s71
      %p80 = scmp.eq.s32.totalorder %s21, 1
      %p81 = por %p79, %p80
      %p82 = scmp.ne.s32.totalorder %s71, %s72
      %p83 = scmp.eq.s32.totalorder %s21, 0
      %p84 = por %p82, %p83
      %p85 = scmp.ne.s32.totalorder %s71, %s72
      %p86 = scmp.eq.s32.totalorder %s22, 1
      %p87 = por %p85, %p86
      %p89 = scmp.ne.s32.totalorder %s72, %s88
      %p90 = scmp.eq.s32.totalorder %s22, 0
      %p91 = por %p89, %p90
      %s92 = ssub.s32 %s23, %s35
      %s93 = ssub.s32 %s24, %s31
      %s94 = sor.u32 %s92, %s93
      %p95 = scmp.eq.s32.totalorder %s94, 0
      %s97 = sadd.s32 %s96, 1
      %s98 = scalar_select %p95, %s96, %s97
      %p101 = pneg %p95
      %p102 = scmp.eq.s32.totalorder %s16, 1
      %p103 = por %p101, %p102
      %p104 = scmp.ne.s32.totalorder %s96, %s99
      %p105 = scmp.eq.s32.totalorder %s16, 0
      %p106 = por %p104, %p105
      %p107 = scmp.ne.s32.totalorder %s96, %s99
      %p108 = scmp.eq.s32.totalorder %s21, 1
      %p109 = por %p107, %p108
      %p110 = scmp.ne.s32.totalorder %s99, %s100
      %p111 = scmp.eq.s32.totalorder %s21, 0
      %p112 = por %p110, %p111
      %p113 = scmp.ne.s32.totalorder %s99, %s100
      %p114 = scmp.eq.s32.totalorder %s22, 1
      %p115 = por %p113, %p114
      %p117 = scmp.ne.s32.totalorder %s100, %s116
      %p118 = scmp.eq.s32.totalorder %s22, 0
      %p119 = por %p117, %p118
      %s121 = sadd.s32 %s120, 1
      %p124 = scmp.eq.s32.totalorder %s16, 1
      %p125 = scmp.ne.s32.totalorder %s120, %s122
      %p126 = scmp.eq.s32.totalorder %s16, 0
      %p127 = por %p125, %p126
      %p128 = scmp.ne.s32.totalorder %s120, %s122
      %p129 = scmp.eq.s32.totalorder %s21, 1
      %p130 = por %p128, %p129
      %p131 = scmp.ne.s32.totalorder %s122, %s123
      %p132 = scmp.eq.s32.totalorder %s21, 0
      %p133 = por %p131, %p132
      %p134 = scmp.ne.s32.totalorder %s122, %s123
      %p135 = scmp.eq.s32.totalorder %s22, 1
      %p136 = por %p134, %p135
      %p138 = scmp.ne.s32.totalorder %s123, %s137
      %p139 = scmp.eq.s32.totalorder %s22, 0
      %p140 = por %p138, %p139
      %s142 = sadd.s32 %s141, 1
      %p145 = scmp.eq.s32.totalorder %s16, 1
      %p146 = scmp.ne.s32.totalorder %s141, %s143
      %p147 = scmp.eq.s32.totalorder %s16, 0
      %p148 = por %p146, %p147
      %p149 = scmp.ne.s32.totalorder %s141, %s143
      %p150 = scmp.eq.s32.totalorder %s21, 1
      %p151 = por %p149, %p150
      %p152 = scmp.ne.s32.totalorder %s143, %s144
      %p153 = scmp.eq.s32.totalorder %s21, 0
      %p154 = por %p152, %p153
      %p155 = scmp.ne.s32.totalorder %s143, %s144
      %p156 = scmp.eq.s32.totalorder %s22, 1
      %p157 = por %p155, %p156
      %p159 = scmp.ne.s32.totalorder %s144, %s158
      %p160 = scmp.eq.s32.totalorder %s22, 0
      %p161 = por %p159, %p160
      %s163 = sadd.s32 %s162, 1
      %p166 = scmp.eq.s32.totalorder %s16, 1
      %p167 = scmp.ne.s32.totalorder %s162, %s164
      %p168 = scmp.eq.s32.totalorder %s16, 0
      %p169 = por %p167, %p168
      %p170 = scmp.ne.s32.totalorder %s162, %s164
      %p171 = scmp.eq.s32.totalorder %s21, 1
      %p172 = por %p170, %p171
      %p173 = scmp.ne.s32.totalorder %s164, %s165
      %p174 = scmp.eq.s32.totalorder %s21, 0
      %p175 = por %p173, %p174
      %p176 = scmp.ne.s32.totalorder %s164, %s165
      %p177 = scmp.eq.s32.totalorder %s22, 1
      %p178 = por %p176, %p177
      %p180 = scmp.ne.s32.totalorder %s165, %s179
      %p181 = scmp.eq.s32.totalorder %s22, 0
      %p182 = por %p180, %p181
      %s184 = sadd.s32 %s183, 1
      %p187 = scmp.eq.s32.totalorder %s16, 1
      %p188 = scmp.ne.s32.totalorder %s183, %s185
      %p189 = scmp.eq.s32.totalorder %s16, 0
      %p190 = por %p188, %p189
      %p191 = scmp.ne.s32.totalorder %s183, %s185
      %p192 = scmp.eq.s32.totalorder %s21, 1
      %p193 = por %p191, %p192
      %p194 = scmp.ne.s32.totalorder %s185, %s186
      %p195 = scmp.eq.s32.totalorder %s21, 0
      %p196 = por %p194, %p195
      %p197 = scmp.ne.s32.totalorder %s185, %s186
      %p198 = scmp.eq.s32.totalorder %s22, 1
      %p199 = por %p197, %p198
      %p201 = scmp.ne.s32.totalorder %s186, %s200
      %p202 = scmp.eq.s32.totalorder %s22, 0
      %p203 = por %p201, %p202
      %s204 = ssub.s32 %s23, %s35
      %s205 = ssub.s32 %s24, %s31
      %s206 = sor.u32 %s204, %s205
      %p207 = scmp.eq.s32.totalorder %s206, 0
      %s209 = sadd.s32 %s208, 1
      %s210 = scalar_select %p207, %s208, %s209
      %p213 = pneg %p207
      %p214 = scmp.eq.s32.totalorder %s16, 1
      %p215 = por %p213, %p214
      %p216 = scmp.ne.s32.totalorder %s208, %s211
      %p217 = scmp.eq.s32.totalorder %s16, 0
      %p218 = por %p216, %p217
      %p219 = scmp.ne.s32.totalorder %s208, %s211
      %p220 = scmp.eq.s32.totalorder %s21, 1
      %p221 = por %p219, %p220
      %p222 = scmp.ne.s32.totalorder %s211, %s212
      %p223 = scmp.eq.s32.totalorder %s21, 0
      %p224 = por %p222, %p223
      %p225 = scmp.ne.s32.totalorder %s211, %s212
      %p226 = scmp.eq.s32.totalorder %s22, 1
      %p227 = por %p225, %p226
      %p229 = scmp.ne.s32.totalorder %s212, %s228
      %p230 = scmp.eq.s32.totalorder %s22, 0
      %p231 = por %p229, %p230
      %p232 = scmp.le.s32.totalorder 1, %s16
      %p233 = scmp.lt.s32.totalorder %s16, 3
      %p234 = pnand %p232, %p233
      %p235 = pneg %p234
      // Predicated region
      $region9: #{tpu_custom_call.1} parent=5 // pred_check
        _
      $region10: #{tpu_custom_call.1} parent=5 // pred_check_branch
        %237 = sbr.rel (%p234) target = $region12
      $region11: #{tpu_custom_call.1} parent=5 // pred_region
        %s238 = ssub.s32 %s16, 1
        // Predicated region
        $region13: #{tpu_custom_call.1} parent=11 // pred_check
          %p239 = pneg %p133
        $region14: #{tpu_custom_call.1} parent=11 // pred_check_branch
          %241 = sbr.rel (%p239) target = $region16
        $region15: #{tpu_custom_call.1} parent=11 // pred_region
          _
        $region16: #{tpu_custom_call.1} parent=11 // pred_fallthru
          _
        // Predicated region
        $region17: #{tpu_custom_call.1} parent=11 // pred_check
          %p242 = pneg %p154
        $region18: #{tpu_custom_call.1} parent=11 // pred_check_branch
          %244 = sbr.rel (%p242) target = $region20
        $region19: #{tpu_custom_call.1} parent=11 // pred_region
          _
        $region20: #{tpu_custom_call.1} parent=11 // pred_fallthru
          _
        // Predicated region
        $region21: #{tpu_custom_call.1} parent=11 // pred_check
          %p245 = pneg %p175
        $region22: #{tpu_custom_call.1} parent=11 // pred_check_branch
          %247 = sbr.rel (%p245) target = $region24
        $region23: #{tpu_custom_call.1} parent=11 // pred_region
          _
        $region24: #{tpu_custom_call.1} parent=11 // pred_fallthru
          _
        // Predicated region
        $region25: #{tpu_custom_call.1} parent=11 // pred_check
          %p248 = pneg %p196
        $region26: #{tpu_custom_call.1} parent=11 // pred_check_branch
          %250 = sbr.rel (%p248) target = $region28
        $region27: #{tpu_custom_call.1} parent=11 // pred_region
          _
        $region28: #{tpu_custom_call.1} parent=11 // pred_fallthru
          _
      $region12: #{tpu_custom_call.1} parent=5 // pred_fallthru
        _
      %p251 = scmp.lt.s32.totalorder %s16, 2
      // Predicated region
      $region29: #{tpu_custom_call.1} parent=5 // pred_check
        %p252 = pneg %p251
      $region30: #{tpu_custom_call.1} parent=5 // pred_check_branch
        %254 = sbr.rel (%p252) target = $region32
      $region31: #{tpu_custom_call.1} parent=5 // pred_region
        // Predicated region
        $region33: #{tpu_custom_call.1} parent=31 // pred_check
          %p255 = pneg %p50
        $region34: #{tpu_custom_call.1} parent=31 // pred_check_branch
          %257 = sbr.rel (%p255) target = $region36
        $region35: #{tpu_custom_call.1} parent=31 // pred_region
          %p258 = scmp.lt.s32.totalorder %s23, 1
          %s259 = scalar_select %p258, %s23, 1
          %p260 = scmp.lt.s32.totalorder %s24, 0
          %s261 = scalar_select %p260, %s24, 0
          %s262 = sadd.s32 %s261, %s259
          %s263 = smul.addr %s262, 4
          %s264 = scalar_lea.vmem %s0, %s263
        $region36: #{tpu_custom_call.1} parent=31 // pred_fallthru
          _
        // Predicated region
        $region37: #{tpu_custom_call.1} parent=31 // pred_check
          %p265 = pneg %p78
        $region38: #{tpu_custom_call.1} parent=31 // pred_check_branch
          %267 = sbr.rel (%p265) target = $region40
        $region39: #{tpu_custom_call.1} parent=31 // pred_region
          %p268 = scmp.lt.s32.totalorder %s23, 1
          %s269 = scalar_select %p268, %s23, 1
          %p270 = scmp.lt.s32.totalorder %s24, 0
          %s271 = scalar_select %p270, %s24, 0
          %s272 = sadd.s32 %s271, %s269
          %s273 = smul.addr %s272, 4
          %s274 = scalar_lea.vmem %s1, %s273
        $region40: #{tpu_custom_call.1} parent=31 // pred_fallthru
          _
        // Predicated region
        $region41: #{tpu_custom_call.1} parent=31 // pred_check
          %p275 = pneg %p106
        $region42: #{tpu_custom_call.1} parent=31 // pred_check_branch
          %277 = sbr.rel (%p275) target = $region44
        $region43: #{tpu_custom_call.1} parent=31 // pred_region
          %p278 = scmp.lt.s32.totalorder %s23, 1
          %s279 = scalar_select %p278, %s23, 1
          %p280 = scmp.lt.s32.totalorder %s24, 0
          %s281 = scalar_select %p280, %s24, 0
          %s282 = sadd.s32 %s281, %s279
          %s283 = smul.addr %s282, 4
          %s284 = scalar_lea.vmem %s2, %s283
        $region44: #{tpu_custom_call.1} parent=31 // pred_fallthru
          _
      $region32: #{tpu_custom_call.1} parent=5 // pred_fallthru
        _
      %p285 = scmp.le.s32.totalorder 1, %s16
      %p286 = scmp.lt.s32.totalorder %s16, 3
      %p287 = pnand %p285, %p286
      %p288 = pneg %p287
      // Predicated region
      $region45: #{tpu_custom_call.1} parent=5 // pred_check
        _
      $region46: #{tpu_custom_call.1} parent=5 // pred_check_branch
        %290 = sbr.rel (%p287) target = $region48
      $region47: #{tpu_custom_call.1} parent=5 // pred_region
        %s291 = ssub.s32 %s16, 1
        %p292 = scmp.lt.s32.totalorder %s25, 1
        %s293 = scalar_select %p292, %s25, 1
        %p294 = scmp.lt.s32.totalorder %s26, 0
        %s295 = scalar_select %p294, %s26, 0
        %s296 = sadd.s32 %s295, %s293
        %s297 = smul.addr %s296, 4
        %s298 = scalar_lea.vmem %s0, %s297
        %p299 = pneg %p56
        %p300 = pneg %p53
        %p301 = scmp.lt.s32.totalorder %s25, 1
        %s302 = scalar_select %p301, %s25, 1
        %p303 = scmp.lt.s32.totalorder %s26, 0
        %s304 = scalar_select %p303, %s26, 0
        %s305 = sadd.s32 %s304, %s302
        %s306 = smul.addr %s305, 4
        %s307 = scalar_lea.vmem %s1, %s306
        %p308 = pneg %p84
        %p309 = pneg %p81
        %p310 = scmp.lt.s32.totalorder %s25, 1
        %s311 = scalar_select %p310, %s25, 1
        %p312 = scmp.lt.s32.totalorder %s26, 0
        %s313 = scalar_select %p312, %s26, 0
        %s314 = sadd.s32 %s313, %s311
        %s315 = smul.addr %s314, 4
        %s316 = scalar_lea.vmem %s2, %s315
        %p317 = pneg %p112
        %p318 = pneg %p109
        %p319 = pneg %p133
        %p320 = pneg %p130
        %p321 = pneg %p154
        %p322 = pneg %p151
        %p323 = pneg %p175
        %p324 = pneg %p172
        %p325 = pneg %p196
        %p326 = pneg %p193
        %p327 = pneg %p224
        %p328 = pneg %p221
        %s329 = sand.u32 %s211, 1
        %s330 = scalar_lea.sflag [#allocation3], %s329
        %s331 = sand.u32 %s211, 1
        %s332 = smul.addr %s331, 4
        %s333 = scalar_lea.vmem [#allocation2], %s332
        %p334 = scmp.lt.s32.totalorder %s25, 1
        %s335 = scalar_select %p334, %s25, 1
        %p336 = scmp.lt.s32.totalorder %s26, 0
        %s337 = scalar_select %p336, %s26, 0
        %s338 = sadd.s32 %s337, %s335
        %s339 = smul.addr %s338, 4
        %s340 = scalar_lea.vmem %s0, %s339
        %p341 = scmp.lt.s32.totalorder %s25, 1
        %s342 = scalar_select %p341, %s25, 1
        %p343 = scmp.lt.s32.totalorder %s26, 0
        %s344 = scalar_select %p343, %s26, 0
        %s345 = sadd.s32 %s344, %s342
        %s346 = smul.addr %s345, 4
        %s347 = scalar_lea.vmem %s1, %s346
        %p348 = scmp.lt.s32.totalorder %s25, 1
        %s349 = scalar_select %p348, %s25, 1
        %p350 = scmp.lt.s32.totalorder %s26, 0
        %s351 = scalar_select %p350, %s26, 0
        %s352 = sadd.s32 %s351, %s349
        %s353 = smul.addr %s352, 4
        %s354 = scalar_lea.vmem %s2, %s353
        %v356 = vld [vmem:[%s340] sm:$0xf]
        %v357 = vld [vmem:[%s347] sm:$0xf]
        %v358 = vld [vmem:[%s354] sm:$0xf]
        %360 = vrot.lane.b32.xlu0 %v356, 2
        %v361 = vpop.permute.xlu0 %360
        %364 = vrot.lane.b32.xlu0 %v358, 35
        %v365 = vpop.permute.xlu0 %364
        %vm367 = vcmask 15360
        %v368 = vsel %vm367, %v357, %v361
        %vm369 = vcmask 285696
        %v370 = vsel %vm369, %v368, %v365
        %v371 = vpack.c.bf16 %v370, %v370
        %v373 = vrot.slane %v371, 6
        %374 = vrot.lane.b32.xlu0 %v373, 127
        %v375 = vpop.permute.xlu0 %374
        %v376 = vrot.slane %v371, 4
        %377 = vrot.lane.b32.xlu0 %v376, 126
        %v378 = vpop.permute.xlu0 %377
        %vm379 = vcmask 1041408
        %v382 = vsel %vm379, %v371, %v375
        %vm383 = vcmask 1043456
        %v385 = vsel %vm383, %v382, %v378
        %v386 = vld [vmem:[%s3] sm:$0x3]
        %v387 = vld [vmem:[%s4] sm:$0xf]
        %389 = vset.pattern.permute.xlu0 0
        %390 = vperm.xlu0 %389, %v387
        %v391 = vpop.permute.xlu0 %390
        %vm393 = vcmask 97280
        %v395 = vsel %vm393, %v386, 0
        %vm397 = vcmask 1045504
        %v398 = vsel %vm397, %v385, 0
        %400 = vmatprep.subr.bf16.mxu0 0
        %401 = vmatpush1.bf16.msra.mxu0 0
        %402 = vmatprep.subr.bf16.mxu0 0
        %403 = vmatpush1.bf16.msra.mxu0 0
        %404 = vmatprep.subr.bf16.mxu0 0
        %405 = vmatpush1.bf16.msra.mxu0 0
        %406 = vmatprep.subr.bf16.mxu0 0
        %407 = vmatpush1.bf16.msra.mxu0 0
        %408 = vmatprep.subr.bf16.mxu0 0
        %409 = vmatpush1.bf16.msra.mxu0 0
        %410 = vmatprep.subr.bf16.mxu0 0
        %411 = vmatpush1.bf16.msra.mxu0 0
        %412 = vmatprep.subr.bf16.mxu0 0
        %413 = vmatpush1.bf16.msra.mxu0 0
        %414 = vmatprep.subr.bf16.mxu0 0
        %415 = vmatpush1.bf16.msra.mxu0 %v398
        %416 = vmatprep.subr.bf16.mxu0 0
        %417 = vmatpush2.bf16.msra.mxu0 0
        %418 = vmatprep.subr.bf16.mxu0 0
        %419 = vmatpush2.bf16.msra.mxu0 0
        %420 = vmatprep.subr.bf16.mxu0 0
        %421 = vmatpush2.bf16.msra.mxu0 0
        %422 = vmatprep.subr.bf16.mxu0 0
        %423 = vmatpush2.bf16.msra.mxu0 0
        %424 = vmatprep.subr.bf16.mxu0 0
        %425 = vmatpush2.bf16.msra.mxu0 0
        %426 = vmatprep.subr.bf16.mxu0 0
        %427 = vmatpush2.bf16.msra.mxu0 0
        %428 = vmatprep.subr.bf16.mxu0 0
        %429 = vmatpush2.bf16.msra.mxu0 0
        %430 = vmatprep.subr.bf16.mxu0 0
        %431 = vmatpush2.bf16.msra.mxu0 0
        %432 = vmatprep.mubr.bf16.mxu0 0
        %433 = vmatmul.mubr.bf16.gmra.mxu0 %v395
        %v434 = vpop.f32.mrf.mxu0
        %v435 = vadd.f32 %v391, %v434
        %v436 = vpop.f32.mrf.mxu0
        %v437 = vpop.f32.mrf.mxu0
        %v438 = vpop.f32.mrf.mxu0
        %439 = vdwg.mxu0
        %v440 = vadd.f32 %v435, 3.0
        %v441 = vmax.f32 %v440, 0.0
        %v442 = vmin.f32 %v441, 6.0
        %v443 = vmul.f32 %v442, 0.16666667
        %v444 = vmul.f32 %v435, %v443
        %v445 = vlaneseq
        %v446 = vand.u32 %v445, 127
        %s447 = smul.u32 %s26, 33
        %s448 = ssub.s32 %s447, 1
        %v449 = vstv %s448
        %v450 = vadd.s32 %v449, %v446
        %vm451 = vcmp.ge.s32.totalorder %v450, 0
        %vm452 = vcmp.lt.s32.totalorder %v450, 33
        %vm453 = vmand %vm451, %vm452
        %v454 = vsel %vm453, %v444, 0.0
        %v455 = vpack.c.bf16 %v454, %v454
        %v457 = vrot.slane %v455, 6
        %458 = vrot.lane.b32.xlu0 %v457, 127
        %v459 = vpop.permute.xlu0 %458
        %v460 = vrot.slane %v455, 4
        %461 = vrot.lane.b32.xlu0 %v460, 126
        %v462 = vpop.permute.xlu0 %461
        %v465 = vsel %vm379, %v455, %v459
        %v467 = vsel %vm383, %v465, %v462
        %v468 = vld [vmem:[%s5] sm:$0x3]
        %v469 = vld [vmem:[%s6] sm:$0xf]
        %471 = vset.pattern.permute.xlu0 0
        %472 = vperm.xlu0 %471, %v469
        %v473 = vpop.permute.xlu0 %472
        %v476 = vsel %vm393, %v468, 0
        %v478 = vsel %vm397, %v467, 0
        %480 = vmatprep.subr.bf16.mxu0 0
        %481 = vmatpush1.bf16.msra.mxu0 0
        %482 = vmatprep.subr.bf16.mxu0 0
        %483 = vmatpush1.bf16.msra.mxu0 0
        %484 = vmatprep.subr.bf16.mxu0 0
        %485 = vmatpush1.bf16.msra.mxu0 0
        %486 = vmatprep.subr.bf16.mxu0 0
        %487 = vmatpush1.bf16.msra.mxu0 0
        %488 = vmatprep.subr.bf16.mxu0 0
        %489 = vmatpush1.bf16.msra.mxu0 0
        %490 = vmatprep.subr.bf16.mxu0 0
        %491 = vmatpush1.bf16.msra.mxu0 0
        %492 = vmatprep.subr.bf16.mxu0 0
        %493 = vmatpush1.bf16.msra.mxu0 0
        %494 = vmatprep.subr.bf16.mxu0 0
        %495 = vmatpush1.bf16.msra.mxu0 %v478
        %496 = vmatprep.subr.bf16.mxu0 0
        %497 = vmatpush2.bf16.msra.mxu0 0
        %498 = vmatprep.subr.bf16.mxu0 0
        %499 = vmatpush2.bf16.msra.mxu0 0
        %500 = vmatprep.subr.bf16.mxu0 0
        %501 = vmatpush2.bf16.msra.mxu0 0
        %502 = vmatprep.subr.bf16.mxu0 0
        %503 = vmatpush2.bf16.msra.mxu0 0
        %504 = vmatprep.subr.bf16.mxu0 0
        %505 = vmatpush2.bf16.msra.mxu0 0
        %506 = vmatprep.subr.bf16.mxu0 0
        %507 = vmatpush2.bf16.msra.mxu0 0
        %508 = vmatprep.subr.bf16.mxu0 0
        %509 = vmatpush2.bf16.msra.mxu0 0
        %510 = vmatprep.subr.bf16.mxu0 0
        %511 = vmatpush2.bf16.msra.mxu0 0
        %512 = vmatprep.mubr.bf16.mxu0 0
        %513 = vmatmul.mubr.bf16.gmra.mxu0 %v476
        %v514 = vpop.f32.mrf.mxu0
        %v515 = vadd.f32 %v473, %v514
        %v516 = vpop.f32.mrf.mxu0
        %v517 = vpop.f32.mrf.mxu0
        %v518 = vpop.f32.mrf.mxu0
        %519 = vdwg.mxu0
        %v520 = vadd.f32 %v515, 3.0
        %v521 = vmax.f32 %v520, 0.0
        %v522 = vmin.f32 %v521, 6.0
        %v523 = vmul.f32 %v522, 0.16666667
        %v524 = vmul.f32 %v515, %v523
        %v525 = vadd.f32 %v524, %v356
        %vm526 = vcmask 265216
        %527 = vst.msk [vmem:[%s333] sm:$0xf] %vm526, %v525
        %s528 = sand.u32 %s211, 1
        %s529 = scalar_lea.sflag [#allocation3], %s528
        %s530 = sand.u32 %s211, 1
        %s531 = smul.addr %s530, 4
        %s532 = scalar_lea.vmem [#allocation2], %s531
        // Predicated region
        $region49: #{tpu_custom_call.1} parent=47 // pred_check
          %p533 = pneg %p221
        $region50: #{tpu_custom_call.1} parent=47 // pred_check_branch
          %535 = sbr.rel (%p533) target = $region52
        $region51: #{tpu_custom_call.1} parent=47 // pred_region
          %s537 = ssub.s32 64, 64
          %538 = vsyncadd %s529, %s537
          %s539 = sadd.s32 %s26, %s25
          %s540 = smul.addr %s539, 64
          %s541 = scalar_lea.hbm %s7, %s540
          %s543 = sshll.u32 %s532, 4
          %s544 = int_to_ptr.vmem [resolvable:$true] %s543
          %546 = dma.vmem_to_hbm [thread:$0]  %s544, 64, %s541, %s529
        $region52: #{tpu_custom_call.1} parent=47 // pred_fallthru
          _
      $region48: #{tpu_custom_call.1} parent=5 // pred_fallthru
        _
      %p547 = scmp.le.s32.totalorder 2, %s16
      // Predicated region
      $region53: #{tpu_custom_call.1} parent=5 // pred_check
        %p548 = pneg %p547
      $region54: #{tpu_custom_call.1} parent=5 // pred_check_branch
        %550 = sbr.rel (%p548) target = $region56
      $region55: #{tpu_custom_call.1} parent=5 // pred_region
        %s551 = ssub.s32 %s16, 2
        // Predicated region
        $region57: #{tpu_custom_call.1} parent=55 // pred_check
          %p552 = pneg %p227
        $region58: #{tpu_custom_call.1} parent=55 // pred_check_branch
          %554 = sbr.rel (%p552) target = $region60
        $region59: #{tpu_custom_call.1} parent=55 // pred_region
          %s555 = sand.u32 %s212, 1
          %s556 = scalar_lea.sflag [#allocation3], %s555
          %s557 = sand.u32 %s212, 1
          %s558 = smul.addr %s557, 4
          %s559 = scalar_lea.vmem [#allocation2], %s558
          %560 = dma.done %s556, 64
        $region60: #{tpu_custom_call.1} parent=55 // pred_fallthru
          _
      $region56: #{tpu_custom_call.1} parent=5 // pred_fallthru
        _
    $region6: #{tpu_custom_call.1} parent=1 // loop_footer
      %s20 = sadd.s32 1, %s16
    $region7: #{tpu_custom_call.1} parent=1 // loop_footer_branch
      %15 = sbr.rel target = $region3
    $region8: #{tpu_custom_call.1} parent=1 // loop_exit
      _
    %561 = vsyncpa [#allocation3], 1
    %s562 = scalar_lea.sflag [#allocation3], 1
    %563 = vsyncpa %s562, 1

</llo_original>
